<compile_context>
chip_gen: v7x
topology: tpu7x:2x2x1
jax: 0.10.0
libtpu: 0.0.40
codegen_flags: <defaults>
</compile_context>

<pallas_src>
import jax
import jax.numpy as jnp
import numpy as np
from jax.experimental import pallas as pl
from jax.experimental.pallas import tpu as pltpu

# ----------------------------- config ---------------------------------------
EPISODES = 2
T = 8
N_AGENTS = 4
N_STATES = 16
QMIX_HIDDEN = 32
PACK_OUT = N_AGENTS * QMIX_HIDDEN + 3 * QMIX_HIDDEN   # 224 fused hyper outputs
# two_hyper_layers = False (single-Linear hyper_w1 / hyper_w2, as in the ref)
# TODO(synk): args.two_hyper_layers=True branch (2-layer hyper_w nets) is not
#             implemented; this kernel covers the default False configuration.


# ----------------------------- kernel ---------------------------------------
def qmix_kernel(x_ref, w_ref, e_ref, out_ref):
    A, S, H = N_AGENTS, N_STATES, QMIX_HIDDEN
    AH = A * H

    x = x_ref[...]                                  # (S+1+A, TB) feature-major
    s_aug = x[:S + 1, :]                            # (S+1, TB): states + ones row

    # --- all four state-conditioned hyper nets (weights AND biases) in ONE
    # --- feature-major MXU matmul: h = [W | b] @ [s ; 1] -------------------
    h = jnp.dot(w_ref[...], s_aug,
                preferred_element_type=jnp.float32)          # (224, TB)

    b1 = h[AH:AH + H, :]                                      # (H, TB)
    w2 = jnp.abs(h[AH + H:AH + 2 * H, :])                     # (H, TB)
    b2_hid = jnp.maximum(h[AH + 2 * H:AH + 3 * H, :], 0.0)    # (H, TB)

    # --- first mixing layer: bmm(q (B,1,A), w1 (B,A,H)) + b1, then ELU -----
    # Per-agent sublane-broadcast multiply-accumulate; every w1 chunk is a
    # sublane-aligned 32-row group, q_a is a (1, TB) lane row.
    acc = b1
    for a in range(A):                       # static unroll over tiny agent axis
        q_a = x[S + 1 + a:S + 2 + a, :]                       # (1, TB)
        acc = acc + q_a * jnp.abs(h[a * H:(a + 1) * H, :])
    # ELU (exp(min(x,0))-1 form lowers to the EUP; expm1 parity within 2e-5)
    hidden = jnp.where(acc > 0.0, acc, jnp.exp(jnp.minimum(acc, 0.0)) - 1.0)

    # --- second mixing layer + hyper_b2 output linear: two M=1 MXU dots ----
    # q_total = ones(1,H) @ (hidden*w2) + wb2b(1,H) @ relu(b2_hid) + bb2b
    e = e_ref[...]                                            # (2, H)
    ones_row = jnp.ones((1, H), jnp.float32)
    d1 = jnp.dot(ones_row, hidden * w2,
                 preferred_element_type=jnp.float32)          # (1, TB)
    d2 = jnp.dot(e[0:1, :], b2_hid,
                 preferred_element_type=jnp.float32)          # (1, TB)
    out_ref[...] = (d1 + d2 + e[1:2, 0:1]).astype(out_ref.dtype)


# ----------------------------- wrapper ---------------------------------------
def pack_params(p):
    """Pack the 12 torch-layout params feature-major.

    Returns:
      Wp:    (224, S+1) fused hyper weights, bias folded in as the last column.
      extra: (2, H) — row 0 = hyper_b2[2] weight, row 1 lane 0 = its bias.
    """
    W = jnp.concatenate([p["wh1"], p["wb1"], p["wh2"], p["wb2a"]], axis=1)  # (S, 224)
    b = jnp.concatenate([p["bh1"], p["bb1"], p["bh2"], p["bb2a"]], axis=1)  # (1, 224)
    Wp = jnp.concatenate([W, b], axis=0).T                                  # (224, S+1)
    extra = jnp.zeros((2, QMIX_HIDDEN), jnp.float32)
    extra = extra.at[0, :].set(p["wb2b"][:, 0])        # hyper_b2[2] weight row
    extra = extra.at[1, 0].set(p["bb2b"][0, 0])        # hyper_b2[2] bias
    return Wp, extra


def _batch_tile(B):
    """Batch tile (lanes per grid step).

    - multiple of 128 -> unmasked full-lane output stores
    - up to 1024 rows/step -> amortizes the ~0.35us per-grid-step overhead
    - >= 2 grid steps whenever B > 128 -> ("parallel",) axis splits across
      both TensorCores on v7x (single-TC v5e/v6e are unaffected)
    """
    if B <= 128:
        return 128
    tb = min(1024, -(-B // 2))
    return -(-tb // 128) * 128


def qmix_forward(q_values, states, params):
    """q_values: (E, T, A) f32; states: (E, T, S) f32 -> (E, T, 1) f32."""
    E, Tn, A = q_values.shape
    S, H = N_STATES, QMIX_HIDDEN
    B = E * Tn
    F = S + 1 + A

    # Feature-major activations: [states ; ones ; q_values], batch on lanes.
    x = jnp.concatenate([states.reshape(B, S).astype(jnp.float32),
                         jnp.ones((B, 1), jnp.float32),
                         q_values.reshape(B, A).astype(jnp.float32)],
                        axis=-1).T                            # (F, B)

    TB = _batch_tile(B)
    B_pad = -(-B // TB) * TB
    if B_pad != B:
        x = jnp.pad(x, ((0, 0), (0, B_pad - B)))              # zero pad -> finite math
    n_tiles = B_pad // TB

    Wp, extra = pack_params(params)

    cost = pl.CostEstimate(
        flops=int(2 * B_pad * (PACK_OUT * (S + 1)
                               + N_AGENTS * QMIX_HIDDEN
                               + 4 * QMIX_HIDDEN)),
        transcendentals=int(B_pad * QMIX_HIDDEN),
        bytes_accessed=int(4 * (24 * B_pad + Wp.size + extra.size + B_pad)),
    )

    out = pl.pallas_call(
        qmix_kernel,
        out_shape=jax.ShapeDtypeStruct((1, B_pad), jnp.float32),
        grid_spec=pltpu.PrefetchScalarGridSpec(
            num_scalar_prefetch=0,
            grid=(n_tiles,),
            in_specs=[
                # activations: batch-tiled on the lane axis
                pl.BlockSpec((F, TB), lambda i: (0, i)),
                # fused hyper weights (+bias column): whole block, VMEM-resident
                pl.BlockSpec((PACK_OUT, S + 1), lambda i: (0, 0)),
                # hyper_b2[2] weight row + bias scalar
                pl.BlockSpec((2, H), lambda i: (0, 0)),
            ],
            # lane-dense output: batch on the lane axis, (1, TB) per step
            out_specs=pl.BlockSpec((1, TB), lambda i: (0, i)),
        ),
        compiler_params=pltpu.CompilerParams(
            dimension_semantics=("parallel",)),
        cost_estimate=cost,
    )(x, Wp, extra)

    return out[0, :B].reshape(E, Tn, 1)


# ------------------------- deterministic params ------------------------------
def make_params(key):
    ks = jax.random.split(key, 12)

    def lin(kw, kb, n_in, n_out):
        bound = 1.0 / np.sqrt(n_in)
        w = jax.random.uniform(kw, (n_in, n_out), jnp.float32, -bound, bound)
        b = jax.random.uniform(kb, (1, n_out), jnp.float32, -bound, bound)
        return w, b

    wh1, bh1 = lin(ks[0], ks[1], N_STATES, N_AGENTS * QMIX_HIDDEN)
    wb1, bb1 = lin(ks[2], ks[3], N_STATES, QMIX_HIDDEN)
    wh2, bh2 = lin(ks[4], ks[5], N_STATES, QMIX_HIDDEN)
    wb2a, bb2a = lin(ks[6], ks[7], N_STATES, QMIX_HIDDEN)
    wb2b, bb2b = lin(ks[8], ks[9], QMIX_HIDDEN, 1)
    return dict(wh1=wh1, bh1=bh1, wb1=wb1, bb1=bb1, wh2=wh2, bh2=bh2,
                wb2a=wb2a, bb2a=bb2a, wb2b=wb2b, bb2b=bb2b)


# ------------------------- pure-JAX reference ---------------------------------
def qmix_reference(q_values, states, p):
    E = q_values.shape[0]
    q = q_values.reshape(-1, 1, N_AGENTS)
    s = states.reshape(-1, N_STATES)
    w1 = jnp.abs(s @ p["wh1"] + p["bh1"]).reshape(-1, N_AGENTS, QMIX_HIDDEN)
    b1 = (s @ p["wb1"] + p["bb1"]).reshape(-1, 1, QMIX_HIDDEN)
    hidden = jax.nn.elu(jnp.einsum("bia,bah->bih", q, w1) + b1)
    w2 = jnp.abs(s @ p["wh2"] + p["bh2"]).reshape(-1, QMIX_HIDDEN, 1)
    b2 = (jnp.maximum(s @ p["wb2a"] + p["bb2a"], 0.0) @ p["wb2b"]
          + p["bb2b"]).reshape(-1, 1, 1)
    q_total = jnp.einsum("bih,bho->bio", hidden, w2) + b2
    return q_total.reshape(E, -1, 1)


# ------------------------------ main ------------------------------------------
if __name__ == "__main__":
    key = jax.random.PRNGKey(0)
    kq, ks, kp = jax.random.split(key, 3)

    q_values = jax.random.normal(kq, (EPISODES, T, N_AGENTS), jnp.float32)
    states = jax.random.normal(ks, (EPISODES, T, N_STATES), jnp.float32)
    params = make_params(kp)

    out = jax.block_until_ready(qmix_forward(q_values, states, params))
    ref = jax.block_until_ready(qmix_reference(q_values, states, params))

    assert out.shape == (EPISODES, T, 1), out.shape
    np.testing.assert_allclose(np.asarray(out), np.asarray(ref),
                               rtol=2e-5, atol=2e-5)
    print("KERNEL_OK")
</pallas_src>

<mosaic_0001>
module attributes {stable_mosaic.version = 11 : i64} {
  func.func @qmix_kernel(%arg0: i32, %arg1: memref<21x128xf32, #tpu.memory_space<vmem>>, %arg2: memref<224x17xf32, #tpu.memory_space<vmem>>, %arg3: memref<2x32xf32, #tpu.memory_space<vmem>>, %arg4: memref<1x128xf32, #tpu.memory_space<vmem>>) attributes {dimension_semantics = [#tpu.dimension_semantics<parallel>], iteration_bounds = array<i64: 1>, scalar_prefetch = 0 : i64, scratch_operands = 0 : i64, tpu.core_type = #tpu.core_type<tc>, window_params = [{transform_indices = @transform_0, window_bounds = array<i64: 21, 128>}, {pipeline_mode = #tpu.pipeline_mode<synchronous>, transform_indices = @transform_1, window_bounds = array<i64: 224, 17>}, {pipeline_mode = #tpu.pipeline_mode<synchronous>, transform_indices = @transform_2, window_bounds = array<i64: 2, 32>}, {transform_indices = @transform_3, window_bounds = array<i64: 1, 128>}]} {
    %c0 = arith.constant 0 : index
    %c0_0 = arith.constant 0 : index
    %0 = vector.load %arg1[%c0, %c0_0] : memref<21x128xf32, #tpu.memory_space<vmem>>, vector<21x128xf32>
    %1 = vector.extract_strided_slice %0 {offsets = [0, 0], sizes = [17, 128], strides = [1, 1]} : vector<21x128xf32> to vector<17x128xf32>
    %c0_1 = arith.constant 0 : index
    %c0_2 = arith.constant 0 : index
    %2 = vector.load %arg2[%c0_1, %c0_2] : memref<224x17xf32, #tpu.memory_space<vmem>>, vector<224x17xf32>
    %cst = arith.constant dense<0.000000e+00> : vector<224x128xf32>
    %3 = tpu.matmul %2, %1, %cst {dimension_numbers = #tpu.dot_dimension_numbers<[1], [0], [0], [1], [0, 0, 1, 1], [], []>} : vector<224x17xf32>, vector<17x128xf32>, vector<224x128xf32> -> vector<224x128xf32>
    %4 = vector.extract_strided_slice %3 {offsets = [128, 0], sizes = [32, 128], strides = [1, 1]} : vector<224x128xf32> to vector<32x128xf32>
    %5 = vector.extract_strided_slice %3 {offsets = [160, 0], sizes = [32, 128], strides = [1, 1]} : vector<224x128xf32> to vector<32x128xf32>
    %6 = math.absf %5 : vector<32x128xf32>
    %7 = vector.extract_strided_slice %3 {offsets = [192, 0], sizes = [32, 128], strides = [1, 1]} : vector<224x128xf32> to vector<32x128xf32>
    %cst_3 = arith.constant 0.000000e+00 : f32
    %8 = vector.broadcast %cst_3 : f32 to vector<32x128xf32>
    %9 = arith.maximumf %7, %8 : vector<32x128xf32>
    %10 = vector.extract_strided_slice %0 {offsets = [17, 0], sizes = [1, 128], strides = [1, 1]} : vector<21x128xf32> to vector<1x128xf32>
    %11 = vector.extract_strided_slice %3 {offsets = [0, 0], sizes = [32, 128], strides = [1, 1]} : vector<224x128xf32> to vector<32x128xf32>
    %12 = math.absf %11 : vector<32x128xf32>
    %13 = vector.broadcast %10 : vector<1x128xf32> to vector<32x128xf32>
    %14 = arith.mulf %13, %12 : vector<32x128xf32>
    %15 = arith.addf %4, %14 : vector<32x128xf32>
    %16 = vector.extract_strided_slice %0 {offsets = [18, 0], sizes = [1, 128], strides = [1, 1]} : vector<21x128xf32> to vector<1x128xf32>
    %17 = vector.extract_strided_slice %3 {offsets = [32, 0], sizes = [32, 128], strides = [1, 1]} : vector<224x128xf32> to vector<32x128xf32>
    %18 = math.absf %17 : vector<32x128xf32>
    %19 = vector.broadcast %16 : vector<1x128xf32> to vector<32x128xf32>
    %20 = arith.mulf %19, %18 : vector<32x128xf32>
    %21 = arith.addf %15, %20 : vector<32x128xf32>
    %22 = vector.extract_strided_slice %0 {offsets = [19, 0], sizes = [1, 128], strides = [1, 1]} : vector<21x128xf32> to vector<1x128xf32>
    %23 = vector.extract_strided_slice %3 {offsets = [64, 0], sizes = [32, 128], strides = [1, 1]} : vector<224x128xf32> to vector<32x128xf32>
    %24 = math.absf %23 : vector<32x128xf32>
    %25 = vector.broadcast %22 : vector<1x128xf32> to vector<32x128xf32>
    %26 = arith.mulf %25, %24 : vector<32x128xf32>
    %27 = arith.addf %21, %26 : vector<32x128xf32>
    %28 = vector.extract_strided_slice %0 {offsets = [20, 0], sizes = [1, 128], strides = [1, 1]} : vector<21x128xf32> to vector<1x128xf32>
    %29 = vector.extract_strided_slice %3 {offsets = [96, 0], sizes = [32, 128], strides = [1, 1]} : vector<224x128xf32> to vector<32x128xf32>
    %30 = math.absf %29 : vector<32x128xf32>
    %31 = vector.broadcast %28 : vector<1x128xf32> to vector<32x128xf32>
    %32 = arith.mulf %31, %30 : vector<32x128xf32>
    %33 = arith.addf %27, %32 : vector<32x128xf32>
    %cst_4 = arith.constant 0.000000e+00 : f32
    %34 = vector.broadcast %cst_4 : f32 to vector<32x128xf32>
    %35 = arith.cmpf ogt, %33, %34 : vector<32x128xf32>
    %cst_5 = arith.constant 0.000000e+00 : f32
    %36 = vector.broadcast %cst_5 : f32 to vector<32x128xf32>
    %37 = arith.minimumf %33, %36 : vector<32x128xf32>
    %38 = math.exp %37 : vector<32x128xf32>
    %cst_6 = arith.constant 1.000000e+00 : f32
    %39 = vector.broadcast %cst_6 : f32 to vector<32x128xf32>
    %40 = arith.subf %38, %39 : vector<32x128xf32>
    %41 = arith.select %35, %33, %40 : vector<32x128xi1>, vector<32x128xf32>
    %c0_7 = arith.constant 0 : index
    %c0_8 = arith.constant 0 : index
    %42 = vector.load %arg3[%c0_7, %c0_8] : memref<2x32xf32, #tpu.memory_space<vmem>>, vector<2x32xf32>
    %cst_9 = arith.constant 1.000000e+00 : f32
    %43 = vector.broadcast %cst_9 : f32 to vector<1x32xf32>
    %44 = arith.mulf %41, %6 : vector<32x128xf32>
    %cst_10 = arith.constant dense<0.000000e+00> : vector<1x128xf32>
    %45 = tpu.matmul %43, %44, %cst_10 {dimension_numbers = #tpu.dot_dimension_numbers<[1], [0], [0], [1], [0, 0, 1, 1], [], []>} : vector<1x32xf32>, vector<32x128xf32>, vector<1x128xf32> -> vector<1x128xf32>
    %46 = vector.extract_strided_slice %42 {offsets = [0, 0], sizes = [1, 32], strides = [1, 1]} : vector<2x32xf32> to vector<1x32xf32>
    %cst_11 = arith.constant dense<0.000000e+00> : vector<1x128xf32>
    %47 = tpu.matmul %46, %9, %cst_11 {dimension_numbers = #tpu.dot_dimension_numbers<[1], [0], [0], [1], [0, 0, 1, 1], [], []>} : vector<1x32xf32>, vector<32x128xf32>, vector<1x128xf32> -> vector<1x128xf32>
    %48 = arith.addf %45, %47 : vector<1x128xf32>
    %49 = vector.extract_strided_slice %42 {offsets = [1, 0], sizes = [1, 1], strides = [1, 1]} : vector<2x32xf32> to vector<1x1xf32>
    %50 = vector.broadcast %49 : vector<1x1xf32> to vector<1x128xf32>
    %51 = arith.addf %48, %50 : vector<1x128xf32>
    %c0_12 = arith.constant 0 : index
    %c0_13 = arith.constant 0 : index
    %52 = vector.load %arg4[%c0_12, %c0_13] : memref<1x128xf32, #tpu.memory_space<vmem>>, vector<1x128xf32>
    tpu.vector_store %arg4[%c0_12, %c0_13], %51 {strides = array<i32>} : memref<1x128xf32, #tpu.memory_space<vmem>>, vector<1x128xf32>,
    return
  }
  func.func @transform_0(%arg0: i32) -> (i32, i32) {
    %c0_i32 = arith.constant 0 : i32
    %c0_i32_0 = arith.constant 0 : i32
    return %c0_i32, %arg0 : i32, i32
  }
  func.func @transform_1(%arg0: i32) -> (i32, i32) {
    %c0_i32 = arith.constant 0 : i32
    %c0_i32_0 = arith.constant 0 : i32
    %c0_i32_1 = arith.constant 0 : i32
    return %c0_i32, %c0_i32_0 : i32, i32
  }
  func.func @transform_2(%arg0: i32) -> (i32, i32) {
    %c0_i32 = arith.constant 0 : i32
    %c0_i32_0 = arith.constant 0 : i32
    %c0_i32_1 = arith.constant 0 : i32
    return %c0_i32, %c0_i32_0 : i32, i32
  }
  func.func @transform_3(%arg0: i32) -> (i32, i32) {
    %c0_i32 = arith.constant 0 : i32
    %c0_i32_0 = arith.constant 0 : i32
    return %c0_i32, %arg0 : i32, i32
  }
}

</mosaic_0001>

<llo_original>
// kernel: tpu_custom_call.1
$region0: #{tpu_custom_call.1}
  #allocation0 [shape = 'u32[]', space=smem, size = 0x4, offset = 0x4, fixed_abs, tag = 'smem constant byte address 0x4 - core index']
  #allocation1 [shape = 'u32[144,128]{1,0:T(1,128)}', space=vmem, size = 0x12000, scoped, tag = 'internal scratch']
  %s0 = inlined_call_operand.vmem [shape: f32[21,128], index: 0, kind: input, shape index: {}]
  %s1 = inlined_call_operand.vmem [shape: f32[224,17], index: 1, kind: input, shape index: {}]
  %s2 = inlined_call_operand.vmem [shape: f32[2,32], index: 2, kind: input, shape index: {}]
  %s3 = inlined_call_operand.hbm [shape: f32[1,128], index: 3, kind: output, shape index: {}]
  %s4 = sld [smem:[#allocation0]]
  $region22: #{tpu_custom_call.1} parent=0
    _
  %s6 = ssub.s32 1, %s4
  %s7 = scalar_select 0, %s6, %s4
  $region1: #{tpu_custom_call.1} parent=0
    #allocation2 [shape = 'u8[512]{0}', space=vmem, size = 0x400, scoped, tag = 'output window, operand 0, single buffered']
    #allocation3 [shape = 's32[1]{0}', space=sflag, size = 0x4, scoped, tag = 'scoped memory for tpu_custom_call.1']
    %8 = vsyncpa [#allocation3], 0
    // Predicated region
    $region2: #{tpu_custom_call.1} parent=1 // pred_check
      _
    $region3: #{tpu_custom_call.1} parent=1 // pred_check_branch
      %10 = sbr.rel (0) target = $region5
    $region4: #{tpu_custom_call.1} parent=1 // pred_region
      _
    $region5: #{tpu_custom_call.1} parent=1 // pred_fallthru
      _
    // Predicated region
    $region6: #{tpu_custom_call.1} parent=1 // pred_check
      _
    $region7: #{tpu_custom_call.1} parent=1 // pred_check_branch
      %12 = sbr.rel (0) target = $region9
    $region8: #{tpu_custom_call.1} parent=1 // pred_region
      _
    $region9: #{tpu_custom_call.1} parent=1 // pred_fallthru
      _
    // Predicated region
    $region10: #{tpu_custom_call.1} parent=1 // pred_check
      _
    $region11: #{tpu_custom_call.1} parent=1 // pred_check_branch
      %14 = sbr.rel (0) target = $region13
    $region12: #{tpu_custom_call.1} parent=1 // pred_region
      _
    $region13: #{tpu_custom_call.1} parent=1 // pred_fallthru
      _
    %v15 = vld [vmem:[%s0] sm:$0xff]
    %v16 = vld [vmem:[%s0 + $0x8] sm:$0xff]
    %v17 = vld [vmem:[%s0 + $0x10] sm:$0x1f]
    %v18 = vld [vmem:[%s1] sm:$0xff]
    %v19 = vld [vmem:[%s1 + $0x8] sm:$0xff]
    %v20 = vld [vmem:[%s1 + $0x10] sm:$0xff]
    %v21 = vld [vmem:[%s1 + $0x18] sm:$0xff]
    %v22 = vld [vmem:[%s1 + $0x20] sm:$0xff]
    %v23 = vld [vmem:[%s1 + $0x28] sm:$0xff]
    %v24 = vld [vmem:[%s1 + $0x30] sm:$0xff]
    %v25 = vld [vmem:[%s1 + $0x38] sm:$0xff]
    %v26 = vld [vmem:[%s1 + $0x40] sm:$0xff]
    %v27 = vld [vmem:[%s1 + $0x48] sm:$0xff]
    %v28 = vld [vmem:[%s1 + $0x50] sm:$0xff]
    %v29 = vld [vmem:[%s1 + $0x58] sm:$0xff]
    %v30 = vld [vmem:[%s1 + $0x60] sm:$0xff]
    %v31 = vld [vmem:[%s1 + $0x68] sm:$0xff]
    %v32 = vld [vmem:[%s1 + $0x70] sm:$0xff]
    %v33 = vld [vmem:[%s1 + $0x78] sm:$0xff]
    %v34 = vld [vmem:[%s1 + $0x80] sm:$0xff]
    %v35 = vld [vmem:[%s1 + $0x88] sm:$0xff]
    %v36 = vld [vmem:[%s1 + $0x90] sm:$0xff]
    %v37 = vld [vmem:[%s1 + $0x98] sm:$0xff]
    %v38 = vld [vmem:[%s1 + $0xa0] sm:$0xff]
    %v39 = vld [vmem:[%s1 + $0xa8] sm:$0xff]
    %v40 = vld [vmem:[%s1 + $0xb0] sm:$0xff]
    %v41 = vld [vmem:[%s1 + $0xb8] sm:$0xff]
    %v42 = vld [vmem:[%s1 + $0xc0] sm:$0xff]
    %v43 = vld [vmem:[%s1 + $0xc8] sm:$0xff]
    %v44 = vld [vmem:[%s1 + $0xd0] sm:$0xff]
    %v45 = vld [vmem:[%s1 + $0xd8] sm:$0xff]
    %vm46 = vcmask 138240
    %v48 = vsel %vm46, %v18, 0
    %v51 = vsel %vm46, %v19, 0
    %v54 = vsel %vm46, %v20, 0
    %v57 = vsel %vm46, %v21, 0
    %v60 = vsel %vm46, %v22, 0
    %v63 = vsel %vm46, %v23, 0
    %v66 = vsel %vm46, %v24, 0
    %v69 = vsel %vm46, %v25, 0
    %v72 = vsel %vm46, %v26, 0
    %v75 = vsel %vm46, %v27, 0
    %v78 = vsel %vm46, %v28, 0
    %v81 = vsel %vm46, %v29, 0
    %v84 = vsel %vm46, %v30, 0
    %v87 = vsel %vm46, %v31, 0
    %v90 = vsel %vm46, %v32, 0
    %v93 = vsel %vm46, %v33, 0
    %v96 = vsel %vm46, %v34, 0
    %v99 = vsel %vm46, %v35, 0
    %v102 = vsel %vm46, %v36, 0
    %v105 = vsel %vm46, %v37, 0
    %v108 = vsel %vm46, %v38, 0
    %v111 = vsel %vm46, %v39, 0
    %v114 = vsel %vm46, %v40, 0
    %v117 = vsel %vm46, %v41, 0
    %v120 = vsel %vm46, %v42, 0
    %v123 = vsel %vm46, %v43, 0
    %v126 = vsel %vm46, %v44, 0
    %v129 = vsel %vm46, %v45, 0
    %vm131 = vcmask 1040384
    %v133 = vsel %vm131, %v17, 0
    %135 = vmatprep.subr.mxu0 0.0
    %136 = vmatpush1.msra.mxu0 %v15
    %137 = vmatprep.subr.mxu0 0.0
    %138 = vmatpush1.msra.mxu0 %v16
    %139 = vmatprep.subr.mxu0 0.0
    %140 = vmatpush1.msra.mxu0 %v133
    %141 = vmatprep.subr.mxu0 0.0
    %142 = vmatpush1.msra.mxu0 0.0
    %143 = vmatprep.subr.mxu0 0.0
    %144 = vmatpush1.msra.mxu0 0.0
    %145 = vmatprep.subr.mxu0 0.0
    %146 = vmatpush1.msra.mxu0 0.0
    %147 = vmatprep.subr.mxu0 0.0
    %148 = vmatpush1.msra.mxu0 0.0
    %149 = vmatprep.subr.mxu0 0.0
    %150 = vmatpush1.msra.mxu0 0.0
    %151 = vmatprep.subr.mxu0 0.0
    %152 = vmatpush1.msra.mxu0 0.0
    %153 = vmatprep.subr.mxu0 0.0
    %154 = vmatpush1.msra.mxu0 0.0
    %155 = vmatprep.subr.mxu0 0.0
    %156 = vmatpush1.msra.mxu0 0.0
    %157 = vmatprep.subr.mxu0 0.0
    %158 = vmatpush1.msra.mxu0 0.0
    %159 = vmatprep.subr.mxu0 0.0
    %160 = vmatpush1.msra.mxu0 0.0
    %161 = vmatprep.subr.mxu0 0.0
    %162 = vmatpush1.msra.mxu0 0.0
    %163 = vmatprep.subr.mxu0 0.0
    %164 = vmatpush1.msra.mxu0 0.0
    %165 = vmatprep.subr.mxu0 0.0
    %166 = vmatpush1.msra.mxu0 0.0
    %167 = vmatprep.subr.mxu0 0.0
    %168 = vmatpush1.msra.mxu0 0.0
    %169 = vmatprep.subr.mxu0 0.0
    %170 = vmatpush1.msra.mxu0 0.0
    %171 = vmatprep.subr.mxu0 0.0
    %172 = vmatpush1.msra.mxu0 0.0
    %173 = vmatprep.subr.mxu0 0.0
    %174 = vmatpush1.msra.mxu0 0.0
    %175 = vmatprep.subr.mxu0 0.0
    %176 = vmatpush1.msra.mxu0 0.0
    %177 = vmatprep.subr.mxu0 0.0
    %178 = vmatpush1.msra.mxu0 0.0
    %179 = vmatprep.subr.mxu0 0.0
    %180 = vmatpush1.msra.mxu0 0.0
    %181 = vmatprep.subr.mxu0 0.0
    %182 = vmatpush1.msra.mxu0 0.0
    %183 = vmatprep.subr.mxu0 0.0
    %184 = vmatpush1.msra.mxu0 0.0
    %185 = vmatprep.subr.mxu0 0.0
    %186 = vmatpush1.msra.mxu0 0.0
    %187 = vmatprep.subr.mxu0 0.0
    %188 = vmatpush1.msra.mxu0 0.0
    %189 = vmatprep.subr.mxu0 0.0
    %190 = vmatpush1.msra.mxu0 0.0
    %191 = vmatprep.subr.mxu0 0.0
    %192 = vmatpush1.msra.mxu0 0.0
    %193 = vmatprep.subr.mxu0 0.0
    %194 = vmatpush1.msra.mxu0 0.0
    %195 = vmatprep.subr.mxu0 0.0
    %196 = vmatpush1.msra.mxu0 0.0
    %197 = vmatprep.subr.mxu0 0.0
    %198 = vmatpush1.msra.mxu0 0.0
    %199 = vmatprep.mubr.f32.mxu0 0.0
    %200 = vmatmul.mubr.f32.gmra.mrb[0].mxu0 %v48
    %v201 = vpop.f32.mrb[0].mxu0
    %v202 = vadd.f32 0.0, %v201
    %v203 = vpop.f32.mrb[0].mxu0
    %204 = vmatprep.mubr.f32.mxu0 0.0
    %205 = vmatmul.mubr.f32.gmra.mrb[0].mxu0 %v51
    %v206 = vpop.f32.mrb[0].mxu0
    %v207 = vadd.f32 0.0, %v206
    %v208 = vpop.f32.mrb[0].mxu0
    %209 = vmatprep.mubr.f32.mxu0 0.0
    %210 = vmatmul.mubr.f32.gmra.mrb[0].mxu0 %v54
    %v211 = vpop.f32.mrb[0].mxu0
    %v212 = vadd.f32 0.0, %v211
    %v213 = vpop.f32.mrb[0].mxu0
    %214 = vmatprep.mubr.f32.mxu0 0.0
    %215 = vmatmul.mubr.f32.gmra.mrb[0].mxu0 %v57
    %v216 = vpop.f32.mrb[0].mxu0
    %v217 = vadd.f32 0.0, %v216
    %v218 = vpop.f32.mrb[0].mxu0
    %219 = vmatprep.mubr.f32.mxu0 0.0
    %220 = vmatmul.mubr.f32.gmra.mrb[0].mxu0 %v60
    %v221 = vpop.f32.mrb[0].mxu0
    %v222 = vadd.f32 0.0, %v221
    %v223 = vpop.f32.mrb[0].mxu0
    %224 = vmatprep.mubr.f32.mxu0 0.0
    %225 = vmatmul.mubr.f32.gmra.mrb[0].mxu0 %v63
    %v226 = vpop.f32.mrb[0].mxu0
    %v227 = vadd.f32 0.0, %v226
    %v228 = vpop.f32.mrb[0].mxu0
    %229 = vmatprep.mubr.f32.mxu0 0.0
    %230 = vmatmul.mubr.f32.gmra.mrb[0].mxu0 %v66
    %v231 = vpop.f32.mrb[0].mxu0
    %v232 = vadd.f32 0.0, %v231
    %v233 = vpop.f32.mrb[0].mxu0
    %234 = vmatprep.mubr.f32.mxu0 0.0
    %235 = vmatmul.mubr.f32.gmra.mrb[0].mxu0 %v69
    %v236 = vpop.f32.mrb[0].mxu0
    %v237 = vadd.f32 0.0, %v236
    %v238 = vpop.f32.mrb[0].mxu0
    %239 = vmatprep.mubr.f32.mxu0 0.0
    %240 = vmatmul.mubr.f32.gmra.mrb[0].mxu0 %v72
    %v241 = vpop.f32.mrb[0].mxu0
    %v242 = vadd.f32 0.0, %v241
    %v243 = vpop.f32.mrb[0].mxu0
    %244 = vmatprep.mubr.f32.mxu0 0.0
    %245 = vmatmul.mubr.f32.gmra.mrb[0].mxu0 %v75
    %v246 = vpop.f32.mrb[0].mxu0
    %v247 = vadd.f32 0.0, %v246
    %v248 = vpop.f32.mrb[0].mxu0
    %249 = vmatprep.mubr.f32.mxu0 0.0
    %250 = vmatmul.mubr.f32.gmra.mrb[0].mxu0 %v78
    %v251 = vpop.f32.mrb[0].mxu0
    %v252 = vadd.f32 0.0, %v251
    %v253 = vpop.f32.mrb[0].mxu0
    %254 = vmatprep.mubr.f32.mxu0 0.0
    %255 = vmatmul.mubr.f32.gmra.mrb[0].mxu0 %v81
    %v256 = vpop.f32.mrb[0].mxu0
    %v257 = vadd.f32 0.0, %v256
    %v258 = vpop.f32.mrb[0].mxu0
    %259 = vmatprep.mubr.f32.mxu0 0.0
    %260 = vmatmul.mubr.f32.gmra.mrb[0].mxu0 %v84
    %v261 = vpop.f32.mrb[0].mxu0
    %v262 = vadd.f32 0.0, %v261
    %v263 = vpop.f32.mrb[0].mxu0
    %264 = vmatprep.mubr.f32.mxu0 0.0
    %265 = vmatmul.mubr.f32.gmra.mrb[0].mxu0 %v87
    %v266 = vpop.f32.mrb[0].mxu0
    %v267 = vadd.f32 0.0, %v266
    %v268 = vpop.f32.mrb[0].mxu0
    %269 = vmatprep.mubr.f32.mxu0 0.0
    %270 = vmatmul.mubr.f32.gmra.mrb[0].mxu0 %v90
    %v271 = vpop.f32.mrb[0].mxu0
    %v272 = vadd.f32 0.0, %v271
    %v273 = vpop.f32.mrb[0].mxu0
    %274 = vmatprep.mubr.f32.mxu0 0.0
    %275 = vmatmul.mubr.f32.gmra.mrb[0].mxu0 %v93
    %v276 = vpop.f32.mrb[0].mxu0
    %v277 = vadd.f32 0.0, %v276
    %v278 = vpop.f32.mrb[0].mxu0
    %279 = vmatprep.mubr.f32.mxu0 0.0
    %280 = vmatmul.mubr.f32.gmra.mrb[0].mxu0 %v96
    %v281 = vpop.f32.mrb[0].mxu0
    %v282 = vadd.f32 0.0, %v281
    %v283 = vpop.f32.mrb[0].mxu0
    %284 = vmatprep.mubr.f32.mxu0 0.0
    %285 = vmatmul.mubr.f32.gmra.mrb[0].mxu0 %v99
    %v286 = vpop.f32.mrb[0].mxu0
    %v287 = vadd.f32 0.0, %v286
    %v288 = vpop.f32.mrb[0].mxu0
    %289 = vmatprep.mubr.f32.mxu0 0.0
    %290 = vmatmul.mubr.f32.gmra.mrb[0].mxu0 %v102
    %v291 = vpop.f32.mrb[0].mxu0
    %v292 = vadd.f32 0.0, %v291
    %v293 = vpop.f32.mrb[0].mxu0
    %294 = vmatprep.mubr.f32.mxu0 0.0
    %295 = vmatmul.mubr.f32.gmra.mrb[0].mxu0 %v105
    %v296 = vpop.f32.mrb[0].mxu0
    %v297 = vadd.f32 0.0, %v296
    %v298 = vpop.f32.mrb[0].mxu0
    %299 = vmatprep.mubr.f32.mxu0 0.0
    %300 = vmatmul.mubr.f32.gmra.mrb[0].mxu0 %v108
    %v301 = vpop.f32.mrb[0].mxu0
    %v302 = vadd.f32 0.0, %v301
    %v303 = vpop.f32.mrb[0].mxu0
    %304 = vmatprep.mubr.f32.mxu0 0.0
    %305 = vmatmul.mubr.f32.gmra.mrb[0].mxu0 %v111
    %v306 = vpop.f32.mrb[0].mxu0
    %v307 = vadd.f32 0.0, %v306
    %v308 = vpop.f32.mrb[0].mxu0
    %309 = vmatprep.mubr.f32.mxu0 0.0
    %310 = vmatmul.mubr.f32.gmra.mrb[0].mxu0 %v114
    %v311 = vpop.f32.mrb[0].mxu0
    %v312 = vadd.f32 0.0, %v311
    %v313 = vpop.f32.mrb[0].mxu0
    %314 = vmatprep.mubr.f32.mxu0 0.0
    %315 = vmatmul.mubr.f32.gmra.mrb[0].mxu0 %v117
    %v316 = vpop.f32.mrb[0].mxu0
    %v317 = vadd.f32 0.0, %v316
    %v318 = vpop.f32.mrb[0].mxu0
    %319 = vmatprep.mubr.f32.mxu0 0.0
    %320 = vmatmul.mubr.f32.gmra.mrb[0].mxu0 %v120
    %v321 = vpop.f32.mrb[0].mxu0
    %v322 = vadd.f32 0.0, %v321
    %v323 = vpop.f32.mrb[0].mxu0
    %324 = vmatprep.mubr.f32.mxu0 0.0
    %325 = vmatmul.mubr.f32.gmra.mrb[0].mxu0 %v123
    %v326 = vpop.f32.mrb[0].mxu0
    %v327 = vadd.f32 0.0, %v326
    %v328 = vpop.f32.mrb[0].mxu0
    %329 = vmatprep.mubr.f32.mxu0 0.0
    %330 = vmatmul.mubr.f32.gmra.mrb[0].mxu0 %v126
    %v331 = vpop.f32.mrb[0].mxu0
    %v332 = vadd.f32 0.0, %v331
    %v333 = vpop.f32.mrb[0].mxu0
    %334 = vmatprep.mubr.f32.mxu0 0.0
    %335 = vmatmul.mubr.f32.gmra.mrb[0].mxu0 %v129
    %v336 = vpop.f32.mrb[0].mxu0
    %v337 = vadd.f32 0.0, %v336
    %v338 = vpop.f32.mrb[0].mxu0
    %339 = vdwg.mxu0
    %v340 = vand.u32 2147483647, %v302
    %v341 = vand.u32 2147483647, %v307
    %v342 = vand.u32 2147483647, %v312
    %v343 = vand.u32 2147483647, %v317
    %v344 = vmax.f32 %v322, 0.0
    %v345 = vmax.f32 %v327, 0.0
    %v346 = vmax.f32 %v332, 0.0
    %v347 = vmax.f32 %v337, 0.0
    %v348 = vand.u32 2147483647, %v202
    %v349 = vand.u32 2147483647, %v207
    %v350 = vand.u32 2147483647, %v212
    %v351 = vand.u32 2147483647, %v217
    %v352 = vlaneseq
    %v353 = vshrl.u32 %v352, 7
    %v354 = vsub.s32 1, %v353
    %v355 = vrot.slane %v17, %v354
    %v356 = vmul.f32 %v355, %v348
    %v357 = vmul.f32 %v355, %v349
    %v358 = vmul.f32 %v355, %v350
    %v359 = vmul.f32 %v355, %v351
    %v360 = vadd.f32 %v282, %v356
    %v361 = vadd.f32 %v287, %v357
    %v362 = vadd.f32 %v292, %v358
    %v363 = vadd.f32 %v297, %v359
    %v364 = vand.u32 2147483647, %v222
    %v365 = vand.u32 2147483647, %v227
    %v366 = vand.u32 2147483647, %v232
    %v367 = vand.u32 2147483647, %v237
    %v368 = vlaneseq
    %v369 = vshrl.u32 %v368, 7
    %v370 = vsub.s32 2, %v369
    %v371 = vrot.slane %v17, %v370
    %v372 = vmul.f32 %v371, %v364
    %v373 = vmul.f32 %v371, %v365
    %v374 = vmul.f32 %v371, %v366
    %v375 = vmul.f32 %v371, %v367
    %v376 = vadd.f32 %v360, %v372
    %v377 = vadd.f32 %v361, %v373
    %v378 = vadd.f32 %v362, %v374
    %v379 = vadd.f32 %v363, %v375
    %v380 = vand.u32 2147483647, %v242
    %v381 = vand.u32 2147483647, %v247
    %v382 = vand.u32 2147483647, %v252
    %v383 = vand.u32 2147483647, %v257
    %v384 = vlaneseq
    %v385 = vshrl.u32 %v384, 7
    %v386 = vsub.s32 3, %v385
    %v387 = vrot.slane %v17, %v386
    %v388 = vmul.f32 %v387, %v380
    %v389 = vmul.f32 %v387, %v381
    %v390 = vmul.f32 %v387, %v382
    %v391 = vmul.f32 %v387, %v383
    %v392 = vadd.f32 %v376, %v388
    %v393 = vadd.f32 %v377, %v389
    %v394 = vadd.f32 %v378, %v390
    %v395 = vadd.f32 %v379, %v391
    %v396 = vand.u32 2147483647, %v262
    %v397 = vand.u32 2147483647, %v267
    %v398 = vand.u32 2147483647, %v272
    %v399 = vand.u32 2147483647, %v277
    %v400 = vlaneseq
    %v401 = vshrl.u32 %v400, 7
    %v402 = vsub.s32 4, %v401
    %v403 = vrot.slane %v17, %v402
    %v404 = vmul.f32 %v403, %v396
    %v405 = vmul.f32 %v403, %v397
    %v406 = vmul.f32 %v403, %v398
    %v407 = vmul.f32 %v403, %v399
    %v408 = vadd.f32 %v392, %v404
    %v409 = vadd.f32 %v393, %v405
    %v410 = vadd.f32 %v394, %v406
    %v411 = vadd.f32 %v395, %v407
    %vm412 = vcmp.gt.f32.partialorder %v408, 0.0
    %vm413 = vcmp.gt.f32.partialorder %v409, 0.0
    %vm414 = vcmp.gt.f32.partialorder %v410, 0.0
    %vm415 = vcmp.gt.f32.partialorder %v411, 0.0
    %v416 = vmin.f32 %v408, 0.0
    %v417 = vmin.f32 %v409, 0.0
    %v418 = vmin.f32 %v410, 0.0
    %v419 = vmin.f32 %v411, 0.0
    %v420 = vmul.f32 %v416, 1.442695
    %v421 = vpow.pop %v420
    %v422 = vmul.f32 %v417, 1.442695
    %v423 = vpow.pop %v422
    %v424 = vmul.f32 %v418, 1.442695
    %v425 = vpow.pop %v424
    %v426 = vmul.f32 %v419, 1.442695
    %v427 = vpow.pop %v426
    %v428 = vsub.f32 %v421, 1.0
    %v429 = vsub.f32 %v423, 1.0
    %v430 = vsub.f32 %v425, 1.0
    %v431 = vsub.f32 %v427, 1.0
    %v432 = vsel %vm412, %v408, %v428
    %v433 = vsel %vm413, %v409, %v429
    %v434 = vsel %vm414, %v410, %v430
    %v435 = vsel %vm415, %v411, %v431
    %v436 = vld [vmem:[%s2] sm:$0x3]
    %v437 = vmul.f32 %v432, %v340
    %v438 = vmul.f32 %v433, %v341
    %v439 = vmul.f32 %v434, %v342
    %v440 = vmul.f32 %v435, %v343
    %vm441 = vcmask 261120
    %v443 = vsel %vm441, %v436, 0
    %445 = vmatprep.subr.mxu0 0.0
    %446 = vmatpush1.msra.mxu0 %v344
    %447 = vmatprep.subr.mxu0 0.0
    %448 = vmatpush1.msra.mxu0 %v345
    %449 = vmatprep.subr.mxu0 0.0
    %450 = vmatpush1.msra.mxu0 %v346
    %451 = vmatprep.subr.mxu0 0.0
    %452 = vmatpush1.msra.mxu0 %v347
    %453 = vmatprep.subr.mxu0 0.0
    %454 = vmatpush1.msra.mxu0 0.0
    %455 = vmatprep.subr.mxu0 0.0
    %456 = vmatpush1.msra.mxu0 0.0
    %457 = vmatprep.subr.mxu0 0.0
    %458 = vmatpush1.msra.mxu0 0.0
    %459 = vmatprep.subr.mxu0 0.0
    %460 = vmatpush1.msra.mxu0 0.0
    %461 = vmatprep.subr.mxu0 0.0
    %462 = vmatpush1.msra.mxu0 0.0
    %463 = vmatprep.subr.mxu0 0.0
    %464 = vmatpush1.msra.mxu0 0.0
    %465 = vmatprep.subr.mxu0 0.0
    %466 = vmatpush1.msra.mxu0 0.0
    %467 = vmatprep.subr.mxu0 0.0
    %468 = vmatpush1.msra.mxu0 0.0
    %469 = vmatprep.subr.mxu0 0.0
    %470 = vmatpush1.msra.mxu0 0.0
    %471 = vmatprep.subr.mxu0 0.0
    %472 = vmatpush1.msra.mxu0 0.0
    %473 = vmatprep.subr.mxu0 0.0
    %474 = vmatpush1.msra.mxu0 0.0
    %475 = vmatprep.subr.mxu0 0.0
    %476 = vmatpush1.msra.mxu0 0.0
    %477 = vmatprep.subr.mxu0 0.0
    %478 = vmatpush1.msra.mxu0 0.0
    %479 = vmatprep.subr.mxu0 0.0
    %480 = vmatpush1.msra.mxu0 0.0
    %481 = vmatprep.subr.mxu0 0.0
    %482 = vmatpush1.msra.mxu0 0.0
    %483 = vmatprep.subr.mxu0 0.0
    %484 = vmatpush1.msra.mxu0 0.0
    %485 = vmatprep.subr.mxu0 0.0
    %486 = vmatpush1.msra.mxu0 0.0
    %487 = vmatprep.subr.mxu0 0.0
    %488 = vmatpush1.msra.mxu0 0.0
    %489 = vmatprep.subr.mxu0 0.0
    %490 = vmatpush1.msra.mxu0 0.0
    %491 = vmatprep.subr.mxu0 0.0
    %492 = vmatpush1.msra.mxu0 0.0
    %493 = vmatprep.subr.mxu0 0.0
    %494 = vmatpush1.msra.mxu0 0.0
    %495 = vmatprep.subr.mxu0 0.0
    %496 = vmatpush1.msra.mxu0 0.0
    %497 = vmatprep.subr.mxu0 0.0
    %498 = vmatpush1.msra.mxu0 0.0
    %499 = vmatprep.subr.mxu0 0.0
    %500 = vmatpush1.msra.mxu0 0.0
    %501 = vmatprep.subr.mxu0 0.0
    %502 = vmatpush1.msra.mxu0 0.0
    %503 = vmatprep.subr.mxu0 0.0
    %504 = vmatpush1.msra.mxu0 0.0
    %505 = vmatprep.subr.mxu0 0.0
    %506 = vmatpush1.msra.mxu0 0.0
    %507 = vmatprep.subr.mxu0 0.0
    %508 = vmatpush1.msra.mxu0 0.0
    %509 = vmatprep.mubr.f32.mxu0 0.0
    %510 = vmatmul.mubr.f32.gmra.mrb[0].mxu0 %v443
    %v511 = vpop.f32.mrb[0].mxu0
    %v512 = vadd.f32 0.0, %v511
    %v513 = vpop.f32.mrb[0].mxu0
    %514 = vdwg.mxu0
    %v516 = vsel %vm441, 1.0, 0
    %518 = vmatprep.subr.mxu0 0.0
    %519 = vmatpush1.msra.mxu0 %v437
    %520 = vmatprep.subr.mxu0 0.0
    %521 = vmatpush1.msra.mxu0 %v438
    %522 = vmatprep.subr.mxu0 0.0
    %523 = vmatpush1.msra.mxu0 %v439
    %524 = vmatprep.subr.mxu0 0.0
    %525 = vmatpush1.msra.mxu0 %v440
    %526 = vmatprep.subr.mxu0 0.0
    %527 = vmatpush1.msra.mxu0 0.0
    %528 = vmatprep.subr.mxu0 0.0
    %529 = vmatpush1.msra.mxu0 0.0
    %530 = vmatprep.subr.mxu0 0.0
    %531 = vmatpush1.msra.mxu0 0.0
    %532 = vmatprep.subr.mxu0 0.0
    %533 = vmatpush1.msra.mxu0 0.0
    %534 = vmatprep.subr.mxu0 0.0
    %535 = vmatpush1.msra.mxu0 0.0
    %536 = vmatprep.subr.mxu0 0.0
    %537 = vmatpush1.msra.mxu0 0.0
    %538 = vmatprep.subr.mxu0 0.0
    %539 = vmatpush1.msra.mxu0 0.0
    %540 = vmatprep.subr.mxu0 0.0
    %541 = vmatpush1.msra.mxu0 0.0
    %542 = vmatprep.subr.mxu0 0.0
    %543 = vmatpush1.msra.mxu0 0.0
    %544 = vmatprep.subr.mxu0 0.0
    %545 = vmatpush1.msra.mxu0 0.0
    %546 = vmatprep.subr.mxu0 0.0
    %547 = vmatpush1.msra.mxu0 0.0
    %548 = vmatprep.subr.mxu0 0.0
    %549 = vmatpush1.msra.mxu0 0.0
    %550 = vmatprep.subr.mxu0 0.0
    %551 = vmatpush1.msra.mxu0 0.0
    %552 = vmatprep.subr.mxu0 0.0
    %553 = vmatpush1.msra.mxu0 0.0
    %554 = vmatprep.subr.mxu0 0.0
    %555 = vmatpush1.msra.mxu0 0.0
    %556 = vmatprep.subr.mxu0 0.0
    %557 = vmatpush1.msra.mxu0 0.0
    %558 = vmatprep.subr.mxu0 0.0
    %559 = vmatpush1.msra.mxu0 0.0
    %560 = vmatprep.subr.mxu0 0.0
    %561 = vmatpush1.msra.mxu0 0.0
    %562 = vmatprep.subr.mxu0 0.0
    %563 = vmatpush1.msra.mxu0 0.0
    %564 = vmatprep.subr.mxu0 0.0
    %565 = vmatpush1.msra.mxu0 0.0
    %566 = vmatprep.subr.mxu0 0.0
    %567 = vmatpush1.msra.mxu0 0.0
    %568 = vmatprep.subr.mxu0 0.0
    %569 = vmatpush1.msra.mxu0 0.0
    %570 = vmatprep.subr.mxu0 0.0
    %571 = vmatpush1.msra.mxu0 0.0
    %572 = vmatprep.subr.mxu0 0.0
    %573 = vmatpush1.msra.mxu0 0.0
    %574 = vmatprep.subr.mxu0 0.0
    %575 = vmatpush1.msra.mxu0 0.0
    %576 = vmatprep.subr.mxu0 0.0
    %577 = vmatpush1.msra.mxu0 0.0
    %578 = vmatprep.subr.mxu0 0.0
    %579 = vmatpush1.msra.mxu0 0.0
    %580 = vmatprep.subr.mxu0 0.0
    %581 = vmatpush1.msra.mxu0 0.0
    %582 = vmatprep.mubr.f32.mxu0 0.0
    %583 = vmatmul.mubr.f32.gmra.mrb[0].mxu0 %v516
    %v584 = vpop.f32.mrb[0].mxu0
    %v585 = vadd.f32 %v512, %v584
    %v586 = vpop.f32.mrb[0].mxu0
    %587 = vdwg.mxu0
    %588 = vset.pattern.permute.xlu0 0
    %589 = vperm.xlu0 %588, %v436
    %v590 = vpop.permute.xlu0 %589
    %v591 = vrot.slane %v590, 1
    %v593 = vadd.f32 %v585, %v591
    %594 = vst [vmem:[#allocation2] sm:$0x1] %v593
    // Predicated region
    $region14: #{tpu_custom_call.1} parent=1 // pred_check
      _
    $region15: #{tpu_custom_call.1} parent=1 // pred_check_branch
      %596 = sbr.rel (0) target = $region17
    $region16: #{tpu_custom_call.1} parent=1 // pred_region
      %s598 = ssub.s32 16, 16
      %599 = vsyncadd [#allocation3], %s598
      %s601 = sshll.u32 [#allocation2], 4
      %s602 = int_to_ptr.vmem [resolvable:$true] %s601
      %604 = dma.vmem_to_hbm [thread:$0]  %s602, 16, %s3, [#allocation3]
    $region17: #{tpu_custom_call.1} parent=1 // pred_fallthru
      _
    // Predicated region
    $region18: #{tpu_custom_call.1} parent=1 // pred_check
      _
    $region19: #{tpu_custom_call.1} parent=1 // pred_check_branch
      %606 = sbr.rel (0) target = $region21
    $region20: #{tpu_custom_call.1} parent=1 // pred_region
      %607 = dma.done [#allocation3], 16
    $region21: #{tpu_custom_call.1} parent=1 // pred_fallthru
      _
    %608 = vsyncpa [#allocation3], 1

</llo_original>
